<compile_context>
chip_gen: v5e
topology: v5e:2x2
jax: 0.10.0
libtpu: 0.0.40
codegen_flags: <defaults>
</compile_context>

<pallas_src>
import functools

import jax
import jax.numpy as jnp
from jax import lax
from jax.experimental import pallas as pl
from jax.experimental.pallas import tpu as pltpu


def _cdiv(a, b):
    return -(-a // b)


def _round_up(a, b):
    return _cdiv(a, b) * b


def _vmem_capacity_bytes():
    """Per-core VMEM capacity; conservative fallback (v7x: 64 MiB/TC) if the query fails."""
    try:
        return int(pltpu.get_tpu_info().vmem_capacity_bytes)
    except Exception:
        return 64 * 1024 * 1024


def _pick_block_n(n_rows, d, bank_itemsize, out_itemsize, max_batch, vmem_budget):
    """Largest lane-dense N tile whose double-buffered working set fits the VMEM budget,
    capped so the 1-D grid has >= 2 steps (both v7x TensorCores stream; no-op on v5e/v6e)."""
    if n_rows <= 256:
        return int(n_rows)                                    # single full-extent tile
    # Per tile column: 2x (double-buffer) bank rows + 2x output rows.
    per_col = 2 * d * bank_itemsize + 2 * max_batch * out_itemsize
    tn = vmem_budget // max(per_col, 1)
    tn = min(tn, 32768, _round_up(_cdiv(n_rows, 2), 256))
    # Multiple of 256: unpadded MXU passes, unmasked lane-dense stores.
    return int(max(256, (int(tn) // 256) * 256))


# --------------------------------------------------------------------------------------
# Kernels
# --------------------------------------------------------------------------------------
def _logits_kernel(x_ref, mem_ref, out_ref, *, inv_T, scale_x):
    """out = (x @ mem_tile.T) / T for one (TN, D) slab of the memory bank."""
    x = x_ref[...]
    if scale_x:
        x = x * inv_T                      # fold 1/T into the tiny (B, D) LHS (f32 inputs)
    acc = lax.dot_general(
        x, mem_ref[...],
        dimension_numbers=(((1,), (1,)), ((), ())),   # x[B,D] . m[TN,D] -> [B,TN]
        preferred_element_type=jnp.float32)
    if not scale_x:
        acc = acc * inv_T                  # low-precision inputs: scale the f32 accumulator
    out_ref[...] = acc.astype(out_ref.dtype)


def _exp_kernel(x_ref, mem_ref, exp_ref, sum_ref, *, inv_T, scale_x):
    """Fused use_softmax=False body: e = exp((x @ m.T)/T) + per-tile row partial sums.
    No padded-column mask: padded bank rows are exactly zero -> exp(0) == 1.0, and the
    wrapper subtracts that exact contribution from the normalizer."""
    x = x_ref[...]
    if scale_x:
        x = x * inv_T
    s = lax.dot_general(
        x, mem_ref[...],
        dimension_numbers=(((1,), (1,)), ((), ())),
        preferred_element_type=jnp.float32)
    if not scale_x:
        s = s * inv_T
    e = jnp.exp(s)                                            # EUP slot; free when mem-bound
    exp_ref[...] = e.astype(exp_ref.dtype)
    row_sums = jnp.sum(e, axis=1, keepdims=True)              # (B, 1) partial sums
    sum_ref[...] = jnp.broadcast_to(row_sums, sum_ref.shape)  # replicate across 128 lanes


@functools.partial(jax.jit, static_argnames=("n", "n_pad", "nt", "n_lem"))
def _exp_finalize(e, sums, *, n, n_pad, nt, n_lem):
    """Single fused XLA pass: global normalizer + slice + divide."""
    b = e.shape[0]
    per_row = sums.reshape(b, nt, 128)[:, :, 0]               # de-replicate lane broadcast
    total = jnp.sum(per_row) - b * (n_pad - n)                # remove exp(0)=1 padded cols
    z_l = (total / (b * n)) * n_lem
    out = (e[:, :n] / z_l).astype(e.dtype)
    return out, z_l


# --------------------------------------------------------------------------------------
# Module
# --------------------------------------------------------------------------------------
class LinearAverage:
    """JAX/Pallas port of LinearAverage (forward path only)."""

    def __init__(self, inputSize, outputSize, T=0.05, momentum=0.5,
                 bank_dtype=jnp.bfloat16, out_dtype=jnp.float32,
                 max_batch=256, block_n=None):
        self.inputSize = int(inputSize)
        self.outputSize = int(outputSize)
        self.nLem = int(outputSize)
        self.T = float(T)
        self.momentum = float(momentum)
        self.bank_dtype = jnp.dtype(bank_dtype)   # bf16 recommended: halves the bank stream
        self.out_dtype = jnp.dtype(out_dtype)     # bf16 opt-in halves the (B, N) store
        self.max_batch = int(max_batch)
        self._requested_block_n = block_n

        # Per-generation VMEM sizing (v5e/v6e: 128 MiB, v7x: 64 MiB per TensorCore).
        vmem_cap = _vmem_capacity_bytes()
        self._vmem_budget = int(0.40 * vmem_cap)
        self._vmem_limit = int(0.75 * vmem_cap)

        # Buffers (as in the PyTorch module); the bank starts at zeros.
        self.memory = jnp.zeros((self.outputSize, self.inputSize), self.bank_dtype)
        self._prepare_bank(self.memory)

    # ----- bank maintenance (one-time cast + pad; never per forward) ------------------
    def set_memory(self, memory):
        assert memory.shape == (self.outputSize, self.inputSize)
        self._prepare_bank(jnp.asarray(memory, self.bank_dtype))

    def _prepare_bank(self, memory):
        self.memory = memory                      # canonical, unpadded bank (bank_dtype)
        n, d = memory.shape
        if self._requested_block_n is not None:
            bn = int(self._requested_block_n)
        else:
            bn = _pick_block_n(n, d, self.bank_dtype.itemsize, self.out_dtype.itemsize,
                               self.max_batch, self._vmem_budget)
        self._block_n = bn
        self._nt = _cdiv(n, bn)
        self._n_pad = self._nt * bn
        if self._n_pad == n:
            self._padded_memory = memory
        else:
            # One-time pad (module state). Zero rows -> logits 0 / exp 1 (corrected exactly).
            self._padded_memory = jnp.pad(memory, ((0, self._n_pad - n), (0, 0)))

    # ----- forward --------------------------------------------------------------------
    def forward(self, x, use_softmax=True, return_padded=False, return_unnormalized=False):
        B, D = x.shape
        assert D == self.inputSize, "inputSize mismatch between x and memory"
        mem = self._padded_memory
        N, N_pad, block_n, nt = self.outputSize, self._n_pad, self._block_n, self._nt

        if x.dtype != mem.dtype:
            x = x.astype(mem.dtype)               # only the tiny (B, D) LHS is cast per call
        scale_x = (x.dtype == jnp.float32)        # exact-enough 1/T fold only when f32
        inv_T = float(1.0 / self.T)

        x_spec = pl.BlockSpec((B, D), lambda j: (0, 0))            # resident across grid
        mem_spec = pl.BlockSpec((block_n, D), lambda j: (j, 0))    # streamed, double-buffered
        out_spec = pl.BlockSpec((B, block_n), lambda j: (0, j))    # lane-dense output slab
        compiler_params = pltpu.CompilerParams(
            dimension_semantics=("parallel",),                     # 2 TCs on v7x
            vmem_limit_bytes=self._vmem_limit,
        )
        flops = 2 * B * N_pad * D
        base_bytes = (B * D * x.dtype.itemsize
                      + N_pad * D * mem.dtype.itemsize
                      + B * N_pad * self.out_dtype.itemsize)

        if use_softmax:
            kernel = functools.partial(_logits_kernel, inv_T=inv_T, scale_x=scale_x)
            logits = pl.pallas_call(
                kernel,
                out_shape=jax.ShapeDtypeStruct((B, N_pad), self.out_dtype),
                grid=(nt,),
                in_specs=[x_spec, mem_spec],
                out_specs=out_spec,
                compiler_params=compiler_params,
                cost_estimate=pl.CostEstimate(flops=flops, transcendentals=0,
                                              bytes_accessed=base_bytes),
            )(x, mem)
            if return_padded or N_pad == N:
                return logits
            # TODO(synk): consumers that tolerate the padded slab should pass
            # return_padded=True to skip this (B, N) copy.
            return logits[:, :N]

        kernel = functools.partial(_exp_kernel, inv_T=inv_T, scale_x=scale_x)
        e, sums = pl.pallas_call(
            kernel,
            out_shape=(jax.ShapeDtypeStruct((B, N_pad), self.out_dtype),
                       jax.ShapeDtypeStruct((B, 128 * nt), jnp.float32)),
            grid=(nt,),
            in_specs=[x_spec, mem_spec],
            out_specs=(out_spec, pl.BlockSpec((B, 128), lambda j: (0, j))),
            compiler_params=compiler_params,
            cost_estimate=pl.CostEstimate(flops=flops, transcendentals=B * N_pad,
                                          bytes_accessed=base_bytes + B * 128 * nt * 4),
        )(x, mem)

        if return_unnormalized:
            # Give the consumer (e, Z_l) so 1/Z_l can be folded downstream (no extra pass).
            per_row = sums.reshape(B, nt, 128)[:, :, 0]
            total = jnp.sum(per_row) - B * (N_pad - N)
            z_l = (total / (B * N)) * self.nLem
            return (e if return_padded else e[:, :N]), z_l

        # TODO(synk): PyTorch pulls Z_l to host via .item(); here it stays traced on-device.
        out, _ = _exp_finalize(e, sums, n=N, n_pad=N_pad, nt=nt, n_lem=self.nLem)
        return out

    __call__ = forward


# --------------------------------------------------------------------------------------
# Self-test
# --------------------------------------------------------------------------------------
if __name__ == "__main__":
    # Small deterministic example: inputSize D=64, memory bank N=1000, batch B=8.
    B, D, N = 8, 64, 1000
    T = 0.05

    key = jax.random.PRNGKey(0)
    kx, km = jax.random.split(key)
    x32 = jax.random.normal(kx, (B, D), dtype=jnp.float32)
    x32 = x32 / jnp.linalg.norm(x32, axis=1, keepdims=True)          # L2-normalized features
    m32 = jax.random.normal(km, (N, D), dtype=jnp.float32)
    m32 = m32 / jnp.linalg.norm(m32, axis=1, keepdims=True)          # as update_weight maintains

    # Recommended maintained representation: bf16 bank, cast + pre-padded ONCE here.
    mod = LinearAverage(D, N, T=T, bank_dtype=jnp.bfloat16)
    mod.set_memory(m32)
    x_bf = x32.astype(jnp.bfloat16)
    xr = x_bf.astype(jnp.float32)
    mr = mod.memory.astype(jnp.float32)
    ref = (xr @ mr.T) / T

    # 1) use_softmax=True, bf16 bank, auto tile (N=1000 -> block_n=512, 2 ragged tiles).
    out = jax.block_until_ready(mod.forward(x_bf, use_softmax=True))
    assert out.shape == (B, N)
    assert jnp.allclose(out, ref, atol=1e-2, rtol=1e-3)

    # 2) use_softmax=False: fused exp + partial sums; padded columns corrected exactly.
    out_e = jax.block_until_ready(mod.forward(x_bf, use_softmax=False))
    e_ref = jnp.exp(ref)
    ref_e = e_ref / (jnp.mean(e_ref) * N)
    assert out_e.shape == (B, N)
    assert jnp.allclose(out_e, ref_e, atol=1e-8, rtol=2e-2)

    # 3) f32 bank path (default MXU precision; reference computed the same way on-device).
    mod32 = LinearAverage(D, N, T=T, bank_dtype=jnp.float32)
    mod32.set_memory(m32)
    out32 = jax.block_until_ready(mod32.forward(x32, use_softmax=True))
    ref32 = (x32 @ m32.T) / T
    assert out32.shape == (B, N)
    assert jnp.allclose(out32, ref32, atol=0.2, rtol=1e-2)

    print("KERNEL_OK")
</pallas_src>

<mosaic_0001>
module attributes {stable_mosaic.version = 11 : i64} {
  func.func @_logits_kernel(%arg0: i32, %arg1: memref<8x64xbf16, #tpu.memory_space<vmem>>, %arg2: memref<512x64xbf16, #tpu.memory_space<vmem>>, %arg3: memref<8x512xf32, #tpu.memory_space<vmem>>) attributes {dimension_semantics = [#tpu.dimension_semantics<parallel>], iteration_bounds = array<i64: 2>, scalar_prefetch = 0 : i64, scratch_operands = 0 : i64, tpu.core_type = #tpu.core_type<tc>, window_params = [{pipeline_mode = #tpu.pipeline_mode<synchronous>, transform_indices = @transform_0, window_bounds = array<i64: 8, 64>}, {transform_indices = @transform_1, window_bounds = array<i64: 512, 64>}, {transform_indices = @transform_2, window_bounds = array<i64: 8, 512>}]} {
    %c0 = arith.constant 0 : index
    %c0_0 = arith.constant 0 : index
    %0 = vector.load %arg1[%c0, %c0_0] : memref<8x64xbf16, #tpu.memory_space<vmem>>, vector<8x64xbf16>
    %c0_1 = arith.constant 0 : index
    %c0_2 = arith.constant 0 : index
    %1 = vector.load %arg2[%c0_1, %c0_2] : memref<512x64xbf16, #tpu.memory_space<vmem>>, vector<512x64xbf16>
    %cst = arith.constant dense<0.000000e+00> : vector<8x512xf32>
    %2 = tpu.matmul %0, %1, %cst {dimension_numbers = #tpu.dot_dimension_numbers<[1], [1], [0], [0], [0, 0, 1, 0], [], []>} : vector<8x64xbf16>, vector<512x64xbf16>, vector<8x512xf32> -> vector<8x512xf32>
    %cst_3 = arith.constant 2.000000e+01 : f32
    %3 = vector.broadcast %cst_3 : f32 to vector<8x512xf32>
    %4 = arith.mulf %2, %3 : vector<8x512xf32>
    %c0_4 = arith.constant 0 : index
    %c0_5 = arith.constant 0 : index
    %5 = vector.load %arg3[%c0_4, %c0_5] : memref<8x512xf32, #tpu.memory_space<vmem>>, vector<8x512xf32>
    tpu.vector_store %arg3[%c0_4, %c0_5], %4 {strides = array<i32>} : memref<8x512xf32, #tpu.memory_space<vmem>>, vector<8x512xf32>,
    return
  }
  func.func @transform_0(%arg0: i32) -> (i32, i32) {
    %c0_i32 = arith.constant 0 : i32
    %c0_i32_0 = arith.constant 0 : i32
    %c0_i32_1 = arith.constant 0 : i32
    return %c0_i32, %c0_i32_0 : i32, i32
  }
  func.func @transform_1(%arg0: i32) -> (i32, i32) {
    %c0_i32 = arith.constant 0 : i32
    %c0_i32_0 = arith.constant 0 : i32
    return %arg0, %c0_i32 : i32, i32
  }
  func.func @transform_2(%arg0: i32) -> (i32, i32) {
    %c0_i32 = arith.constant 0 : i32
    %c0_i32_0 = arith.constant 0 : i32
    return %c0_i32, %arg0 : i32, i32
  }
}

</mosaic_0001>

<llo_original>
// kernel: tpu_custom_call.1
$region0: #{tpu_custom_call.1}
  #allocation0 [shape = 'u32[]', space=smem, size = 0x4, offset = 0x4, fixed_abs, tag = 'smem constant byte address 0x4 - core index']
  #allocation1 [shape = 'u32[72,128]{1,0:T(1,128)}', space=vmem, size = 0x9000, scoped, tag = 'internal scratch']
  %s0 = inlined_call_operand.vmem [shape: bf16[8,64], index: 0, kind: input, shape index: {}]
  %s1 = inlined_call_operand.vmem [shape: bf16[1024,64], index: 1, kind: input, shape index: {}]
  %s2 = inlined_call_operand.hbm [shape: f32[8,1024], index: 2, kind: output, shape index: {}]
  %s3 = sld [smem:[#allocation0]]
  $region41: #{tpu_custom_call.1} parent=0
    _
  %s5 = ssub.s32 1, %s3
  %s6 = scalar_select 0, %s5, %s3
  $region1: #{tpu_custom_call.1} parent=0
    #allocation2 [shape = 'u8[32768]{0}', space=vmem, size = 0x8000, scoped, tag = 'output window, operand 0']
    #allocation3 [shape = 's32[2]{0}', space=sflag, size = 0x8, scoped, tag = 'scoped memory for tpu_custom_call.1']
    %7 = vsyncpa [#allocation3], 0
    %s8 = scalar_lea.sflag [#allocation3], 1
    %9 = vsyncpa %s8, 0
    loop: start=0, step=1, limit=4
    $region2: #{tpu_custom_call.1} parent=1 // loop_pre_header
      _
    $region3: #{tpu_custom_call.1} parent=1 // loop_header
      %s11 = sphi 0, %s15
      %p12 = scmp.ge.s32.totalorder %s11, 4
      %s19 = sphi 0, %s19
      %s21 = sphi 0, %s19
      %s22 = sphi 0, %s21
      %s36 = sphi 0, %s22
      %s42 = sphi 0, %s44
      %s45 = sphi 0, %s42
      %s46 = sphi 0, %s45
      %s62 = sphi 0, %s46
      %s68 = sphi 0, %s70
      %s71 = sphi 0, %s68
      %s72 = sphi 0, %s71
      %s88 = sphi 0, %s72
    $region4: #{tpu_custom_call.1} parent=1 // loop_header_branch
      %14 = sbr.rel (%p12) target = $region8
    $region5: #{tpu_custom_call.1} parent=1 // loop_body
      %s16 = ssub.s32 %s11, 1
      %s17 = ssub.s32 %s11, 2
      %s18 = sadd.s32 %s11, 1
      %s20 = sadd.s32 %s19, 1
      %p23 = scmp.eq.s32.totalorder %s11, 1
      %p24 = scmp.ne.s32.totalorder %s19, %s21
      %p25 = scmp.eq.s32.totalorder %s11, 0
      %p26 = por %p24, %p25
      %p27 = scmp.ne.s32.totalorder %s19, %s21
      %p28 = scmp.eq.s32.totalorder %s16, 1
      %p29 = por %p27, %p28
      %p30 = scmp.ne.s32.totalorder %s21, %s22
      %p31 = scmp.eq.s32.totalorder %s16, 0
      %p32 = por %p30, %p31
      %p33 = scmp.ne.s32.totalorder %s21, %s22
      %p34 = scmp.eq.s32.totalorder %s17, 1
      %p35 = por %p33, %p34
      %p37 = scmp.ne.s32.totalorder %s22, %s36
      %p38 = scmp.eq.s32.totalorder %s17, 0
      %p39 = por %p37, %p38
      %s40 = ssub.s32 %s11, %s18
      %p41 = scmp.eq.s32.totalorder %s40, 0
      %s43 = sadd.s32 %s42, 1
      %s44 = scalar_select %p41, %s42, %s43
      %p47 = pneg %p41
      %p48 = scmp.eq.s32.totalorder %s11, 1
      %p49 = por %p47, %p48
      %p50 = scmp.ne.s32.totalorder %s42, %s45
      %p51 = scmp.eq.s32.totalorder %s11, 0
      %p52 = por %p50, %p51
      %p53 = scmp.ne.s32.totalorder %s42, %s45
      %p54 = scmp.eq.s32.totalorder %s16, 1
      %p55 = por %p53, %p54
      %p56 = scmp.ne.s32.totalorder %s45, %s46
      %p57 = scmp.eq.s32.totalorder %s16, 0
      %p58 = por %p56, %p57
      %p59 = scmp.ne.s32.totalorder %s45, %s46
      %p60 = scmp.eq.s32.totalorder %s17, 1
      %p61 = por %p59, %p60
      %p63 = scmp.ne.s32.totalorder %s46, %s62
      %p64 = scmp.eq.s32.totalorder %s17, 0
      %p65 = por %p63, %p64
      %s66 = ssub.s32 %s11, %s18
      %p67 = scmp.eq.s32.totalorder %s66, 0
      %s69 = sadd.s32 %s68, 1
      %s70 = scalar_select %p67, %s68, %s69
      %p73 = pneg %p67
      %p74 = scmp.eq.s32.totalorder %s11, 1
      %p75 = por %p73, %p74
      %p76 = scmp.ne.s32.totalorder %s68, %s71
      %p77 = scmp.eq.s32.totalorder %s11, 0
      %p78 = por %p76, %p77
      %p79 = scmp.ne.s32.totalorder %s68, %s71
      %p80 = scmp.eq.s32.totalorder %s16, 1
      %p81 = por %p79, %p80
      %p82 = scmp.ne.s32.totalorder %s71, %s72
      %p83 = scmp.eq.s32.totalorder %s16, 0
      %p84 = por %p82, %p83
      %p85 = scmp.ne.s32.totalorder %s71, %s72
      %p86 = scmp.eq.s32.totalorder %s17, 1
      %p87 = por %p85, %p86
      %p89 = scmp.ne.s32.totalorder %s72, %s88
      %p90 = scmp.eq.s32.totalorder %s17, 0
      %p91 = por %p89, %p90
      %p92 = scmp.le.s32.totalorder 1, %s11
      %p93 = scmp.lt.s32.totalorder %s11, 3
      %p94 = pnand %p92, %p93
      %p95 = pneg %p94
      // Predicated region
      $region9: #{tpu_custom_call.1} parent=5 // pred_check
        _
      $region10: #{tpu_custom_call.1} parent=5 // pred_check_branch
        %97 = sbr.rel (%p94) target = $region12
      $region11: #{tpu_custom_call.1} parent=5 // pred_region
        %s98 = ssub.s32 %s11, 1
        // Predicated region
        $region13: #{tpu_custom_call.1} parent=11 // pred_check
          %p99 = pneg %p32
        $region14: #{tpu_custom_call.1} parent=11 // pred_check_branch
          %101 = sbr.rel (%p99) target = $region16
        $region15: #{tpu_custom_call.1} parent=11 // pred_region
          _
        $region16: #{tpu_custom_call.1} parent=11 // pred_fallthru
          _
      $region12: #{tpu_custom_call.1} parent=5 // pred_fallthru
        _
      %p102 = scmp.lt.s32.totalorder %s11, 2
      // Predicated region
      $region17: #{tpu_custom_call.1} parent=5 // pred_check
        %p103 = pneg %p102
      $region18: #{tpu_custom_call.1} parent=5 // pred_check_branch
        %105 = sbr.rel (%p103) target = $region20
      $region19: #{tpu_custom_call.1} parent=5 // pred_region
        // Predicated region
        $region21: #{tpu_custom_call.1} parent=19 // pred_check
          %p106 = pneg %p52
        $region22: #{tpu_custom_call.1} parent=19 // pred_check_branch
          %108 = sbr.rel (%p106) target = $region24
        $region23: #{tpu_custom_call.1} parent=19 // pred_region
          %s109 = smul.u32 64, %s11
          %p110 = scmp.lt.s32.totalorder %s109, 127
          %s111 = scalar_select %p110, %s109, 127
          %s112 = smul.addr %s111, 4
          %s113 = scalar_lea.vmem %s1, %s112
          %s114 = smul.u32 64, %s11
        $region24: #{tpu_custom_call.1} parent=19 // pred_fallthru
          _
      $region20: #{tpu_custom_call.1} parent=5 // pred_fallthru
        _
      %p115 = scmp.le.s32.totalorder 1, %s11
      %p116 = scmp.lt.s32.totalorder %s11, 3
      %p117 = pnand %p115, %p116
      %p118 = pneg %p117
      // Predicated region
      $region25: #{tpu_custom_call.1} parent=5 // pred_check
        _
      $region26: #{tpu_custom_call.1} parent=5 // pred_check_branch
        %120 = sbr.rel (%p117) target = $region28
      $region27: #{tpu_custom_call.1} parent=5 // pred_region
        %s121 = ssub.s32 %s11, 1
        %p122 = pneg %p32
        %p123 = pneg %p29
        %s124 = smul.u32 64, %s16
        %p125 = scmp.lt.s32.totalorder %s124, 127
        %s126 = scalar_select %p125, %s124, 127
        %s127 = smul.addr %s126, 4
        %s128 = scalar_lea.vmem %s1, %s127
        %p129 = pneg %p58
        %p130 = pneg %p55
        %p131 = pneg %p84
        %p132 = pneg %p81
        %s133 = sand.u32 %s71, 1
        %s134 = scalar_lea.sflag [#allocation3], %s133
        %s135 = sand.u32 %s71, 1
        %s136 = smul.addr %s135, 32
        %s137 = scalar_lea.vmem [#allocation2], %s136
        %s138 = smul.u32 64, %s16
        %p139 = scmp.lt.s32.totalorder %s138, 127
        %s140 = scalar_select %p139, %s138, 127
        %s141 = smul.addr %s140, 4
        %s142 = scalar_lea.vmem %s1, %s141
        %s143 = smul.u32 64, %s16
        %s144 = smul.u32 4, %s16
        %v145 = vld [vmem:[%s0] sm:$0xf]
        %v146 = vld [vmem:[%s142] sm:$0xf]
        %v147 = vld [vmem:[%s142 + $0x4] sm:$0xf]
        %v148 = vld [vmem:[%s142 + $0x8] sm:$0xf]
        %v149 = vld [vmem:[%s142 + $0xc] sm:$0xf]
        %v150 = vld [vmem:[%s142 + $0x10] sm:$0xf]
        %v151 = vld [vmem:[%s142 + $0x14] sm:$0xf]
        %v152 = vld [vmem:[%s142 + $0x18] sm:$0xf]
        %v153 = vld [vmem:[%s142 + $0x1c] sm:$0xf]
        %v154 = vld [vmem:[%s142 + $0x20] sm:$0xf]
        %v155 = vld [vmem:[%s142 + $0x24] sm:$0xf]
        %v156 = vld [vmem:[%s142 + $0x28] sm:$0xf]
        %v157 = vld [vmem:[%s142 + $0x2c] sm:$0xf]
        %v158 = vld [vmem:[%s142 + $0x30] sm:$0xf]
        %v159 = vld [vmem:[%s142 + $0x34] sm:$0xf]
        %v160 = vld [vmem:[%s142 + $0x38] sm:$0xf]
        %v161 = vld [vmem:[%s142 + $0x3c] sm:$0xf]
        %v162 = vld [vmem:[%s142 + $0x40] sm:$0xf]
        %v163 = vld [vmem:[%s142 + $0x44] sm:$0xf]
        %v164 = vld [vmem:[%s142 + $0x48] sm:$0xf]
        %v165 = vld [vmem:[%s142 + $0x4c] sm:$0xf]
        %v166 = vld [vmem:[%s142 + $0x50] sm:$0xf]
        %v167 = vld [vmem:[%s142 + $0x54] sm:$0xf]
        %v168 = vld [vmem:[%s142 + $0x58] sm:$0xf]
        %v169 = vld [vmem:[%s142 + $0x5c] sm:$0xf]
        %v170 = vld [vmem:[%s142 + $0x60] sm:$0xf]
        %v171 = vld [vmem:[%s142 + $0x64] sm:$0xf]
        %v172 = vld [vmem:[%s142 + $0x68] sm:$0xf]
        %v173 = vld [vmem:[%s142 + $0x6c] sm:$0xf]
        %v174 = vld [vmem:[%s142 + $0x70] sm:$0xf]
        %v175 = vld [vmem:[%s142 + $0x74] sm:$0xf]
        %v176 = vld [vmem:[%s142 + $0x78] sm:$0xf]
        %v177 = vld [vmem:[%s142 + $0x7c] sm:$0xf]
        %v178 = vld [vmem:[%s142 + $0x80] sm:$0xf]
        %v179 = vld [vmem:[%s142 + $0x84] sm:$0xf]
        %v180 = vld [vmem:[%s142 + $0x88] sm:$0xf]
        %v181 = vld [vmem:[%s142 + $0x8c] sm:$0xf]
        %v182 = vld [vmem:[%s142 + $0x90] sm:$0xf]
        %v183 = vld [vmem:[%s142 + $0x94] sm:$0xf]
        %v184 = vld [vmem:[%s142 + $0x98] sm:$0xf]
        %v185 = vld [vmem:[%s142 + $0x9c] sm:$0xf]
        %v186 = vld [vmem:[%s142 + $0xa0] sm:$0xf]
        %v187 = vld [vmem:[%s142 + $0xa4] sm:$0xf]
        %v188 = vld [vmem:[%s142 + $0xa8] sm:$0xf]
        %v189 = vld [vmem:[%s142 + $0xac] sm:$0xf]
        %v190 = vld [vmem:[%s142 + $0xb0] sm:$0xf]
        %v191 = vld [vmem:[%s142 + $0xb4] sm:$0xf]
        %v192 = vld [vmem:[%s142 + $0xb8] sm:$0xf]
        %v193 = vld [vmem:[%s142 + $0xbc] sm:$0xf]
        %v194 = vld [vmem:[%s142 + $0xc0] sm:$0xf]
        %v195 = vld [vmem:[%s142 + $0xc4] sm:$0xf]
        %v196 = vld [vmem:[%s142 + $0xc8] sm:$0xf]
        %v197 = vld [vmem:[%s142 + $0xcc] sm:$0xf]
        %v198 = vld [vmem:[%s142 + $0xd0] sm:$0xf]
        %v199 = vld [vmem:[%s142 + $0xd4] sm:$0xf]
        %v200 = vld [vmem:[%s142 + $0xd8] sm:$0xf]
        %v201 = vld [vmem:[%s142 + $0xdc] sm:$0xf]
        %v202 = vld [vmem:[%s142 + $0xe0] sm:$0xf]
        %v203 = vld [vmem:[%s142 + $0xe4] sm:$0xf]
        %v204 = vld [vmem:[%s142 + $0xe8] sm:$0xf]
        %v205 = vld [vmem:[%s142 + $0xec] sm:$0xf]
        %v206 = vld [vmem:[%s142 + $0xf0] sm:$0xf]
        %v207 = vld [vmem:[%s142 + $0xf4] sm:$0xf]
        %v208 = vld [vmem:[%s142 + $0xf8] sm:$0xf]
        %v209 = vld [vmem:[%s142 + $0xfc] sm:$0xf]
        %v274 = vunpack.c.l.b16 %v146
        %v275 = vunpack.c.l.b16 %v147
        %v276 = vunpack.c.l.b16 %v148
        %v277 = vunpack.c.l.b16 %v149
        %v278 = vunpack.c.l.b16 %v150
        %v279 = vunpack.c.l.b16 %v151
        %v280 = vunpack.c.l.b16 %v152
        %v281 = vunpack.c.l.b16 %v153
        %v282 = vunpack.c.l.b16 %v154
        %v283 = vunpack.c.l.b16 %v155
        %v284 = vunpack.c.l.b16 %v156
        %v285 = vunpack.c.l.b16 %v157
        %v286 = vunpack.c.l.b16 %v158
        %v287 = vunpack.c.l.b16 %v159
        %v288 = vunpack.c.l.b16 %v160
        %v289 = vunpack.c.l.b16 %v161
        %v290 = vunpack.c.l.b16 %v162
        %v291 = vunpack.c.l.b16 %v163
        %v292 = vunpack.c.l.b16 %v164
        %v293 = vunpack.c.l.b16 %v165
        %v294 = vunpack.c.l.b16 %v166
        %v295 = vunpack.c.l.b16 %v167
        %v296 = vunpack.c.l.b16 %v168
        %v297 = vunpack.c.l.b16 %v169
        %v298 = vunpack.c.l.b16 %v170
        %v299 = vunpack.c.l.b16 %v171
        %v300 = vunpack.c.l.b16 %v172
        %v301 = vunpack.c.l.b16 %v173
        %v302 = vunpack.c.l.b16 %v174
        %v303 = vunpack.c.l.b16 %v175
        %v304 = vunpack.c.l.b16 %v176
        %v305 = vunpack.c.l.b16 %v177
        %v306 = vunpack.c.l.b16 %v178
        %v307 = vunpack.c.l.b16 %v179
        %v308 = vunpack.c.l.b16 %v180
        %v309 = vunpack.c.l.b16 %v181
        %v310 = vunpack.c.l.b16 %v182
        %v311 = vunpack.c.l.b16 %v183
        %v312 = vunpack.c.l.b16 %v184
        %v313 = vunpack.c.l.b16 %v185
        %v314 = vunpack.c.l.b16 %v186
        %v315 = vunpack.c.l.b16 %v187
        %v316 = vunpack.c.l.b16 %v188
        %v317 = vunpack.c.l.b16 %v189
        %v318 = vunpack.c.l.b16 %v190
        %v319 = vunpack.c.l.b16 %v191
        %v320 = vunpack.c.l.b16 %v192
        %v321 = vunpack.c.l.b16 %v193
        %v322 = vunpack.c.l.b16 %v194
        %v323 = vunpack.c.l.b16 %v195
        %v324 = vunpack.c.l.b16 %v196
        %v325 = vunpack.c.l.b16 %v197
        %v326 = vunpack.c.l.b16 %v198
        %v327 = vunpack.c.l.b16 %v199
        %v328 = vunpack.c.l.b16 %v200
        %v329 = vunpack.c.l.b16 %v201
        %v330 = vunpack.c.l.b16 %v202
        %v331 = vunpack.c.l.b16 %v203
        %v332 = vunpack.c.l.b16 %v204
        %v333 = vunpack.c.l.b16 %v205
        %v334 = vunpack.c.l.b16 %v206
        %v335 = vunpack.c.l.b16 %v207
        %v336 = vunpack.c.l.b16 %v208
        %v337 = vunpack.c.l.b16 %v209
        %v338 = vpack.c.b16 %v275, %v274
        %v339 = vpack.c.b16 %v277, %v276
        %v340 = vpack.c.b16 %v279, %v278
        %v341 = vpack.c.b16 %v281, %v280
        %v342 = vpack.c.b16 %v283, %v282
        %v343 = vpack.c.b16 %v285, %v284
        %v344 = vpack.c.b16 %v287, %v286
        %v345 = vpack.c.b16 %v289, %v288
        %v346 = vpack.c.b16 %v291, %v290
        %v347 = vpack.c.b16 %v293, %v292
        %v348 = vpack.c.b16 %v295, %v294
        %v349 = vpack.c.b16 %v297, %v296
        %v350 = vpack.c.b16 %v299, %v298
        %v351 = vpack.c.b16 %v301, %v300
        %v352 = vpack.c.b16 %v303, %v302
        %v353 = vpack.c.b16 %v305, %v304
        %v354 = vpack.c.b16 %v307, %v306
        %v355 = vpack.c.b16 %v309, %v308
        %v356 = vpack.c.b16 %v311, %v310
        %v357 = vpack.c.b16 %v313, %v312
        %v358 = vpack.c.b16 %v315, %v314
        %v359 = vpack.c.b16 %v317, %v316
        %v360 = vpack.c.b16 %v319, %v318
        %v361 = vpack.c.b16 %v321, %v320
        %v362 = vpack.c.b16 %v323, %v322
        %v363 = vpack.c.b16 %v325, %v324
        %v364 = vpack.c.b16 %v327, %v326
        %v365 = vpack.c.b16 %v329, %v328
        %v366 = vpack.c.b16 %v331, %v330
        %v367 = vpack.c.b16 %v333, %v332
        %v368 = vpack.c.b16 %v335, %v334
        %v369 = vpack.c.b16 %v337, %v336
        %vm370 = vcmask 523264
        %v372 = vsel %vm370, %v145, 0
        %v375 = vsel %vm370, %v338, 0
        %v378 = vsel %vm370, %v339, 0
        %v381 = vsel %vm370, %v340, 0
        %v384 = vsel %vm370, %v341, 0
        %v387 = vsel %vm370, %v342, 0
        %v390 = vsel %vm370, %v343, 0
        %v393 = vsel %vm370, %v344, 0
        %v396 = vsel %vm370, %v345, 0
        %v399 = vsel %vm370, %v346, 0
        %v402 = vsel %vm370, %v347, 0
        %v405 = vsel %vm370, %v348, 0
        %v408 = vsel %vm370, %v349, 0
        %v411 = vsel %vm370, %v350, 0
        %v414 = vsel %vm370, %v351, 0
        %v417 = vsel %vm370, %v352, 0
        %v420 = vsel %vm370, %v353, 0
        %v423 = vsel %vm370, %v354, 0
        %v426 = vsel %vm370, %v355, 0
        %v429 = vsel %vm370, %v356, 0
        %v432 = vsel %vm370, %v357, 0
        %v435 = vsel %vm370, %v358, 0
        %v438 = vsel %vm370, %v359, 0
        %v441 = vsel %vm370, %v360, 0
        %v444 = vsel %vm370, %v361, 0
        %v447 = vsel %vm370, %v362, 0
        %v450 = vsel %vm370, %v363, 0
        %v453 = vsel %vm370, %v364, 0
        %v456 = vsel %vm370, %v365, 0
        %v459 = vsel %vm370, %v366, 0
        %v462 = vsel %vm370, %v367, 0
        %v465 = vsel %vm370, %v368, 0
        %v468 = vsel %vm370, %v369, 0
        %470 = vmatpush.bf16.xpose.msra.mxu0 %v396
        %471 = vmatpush.bf16.xpose.msra.mxu0 %v393
        %472 = vmatpush.bf16.xpose.msra.mxu0 %v390
        %473 = vmatpush.bf16.xpose.msra.mxu0 %v387
        %474 = vmatpush.bf16.xpose.msra.mxu0 %v384
        %475 = vmatpush.bf16.xpose.msra.mxu0 %v381
        %476 = vmatpush.bf16.xpose.msra.mxu0 %v378
        %477 = vmatpush.bf16.xpose.msra.mxu0 %v375
        %478 = vmatmul.bf16.gmra.mxu0 %v372
        %v479 = vpop.f32.mrf.mxu0
        %v480 = vadd.f32 0.0, %v479
        %v481 = vpop.f32.mrf.mxu0
        %482 = vdwg.mxu0
        %483 = vmatpush.bf16.xpose.msra.mxu0 %v420
        %484 = vmatpush.bf16.xpose.msra.mxu0 %v417
        %485 = vmatpush.bf16.xpose.msra.mxu0 %v414
        %486 = vmatpush.bf16.xpose.msra.mxu0 %v411
        %487 = vmatpush.bf16.xpose.msra.mxu0 %v408
        %488 = vmatpush.bf16.xpose.msra.mxu0 %v405
        %489 = vmatpush.bf16.xpose.msra.mxu0 %v402
        %490 = vmatpush.bf16.xpose.msra.mxu0 %v399
        %491 = vmatmul.bf16.gmra.mxu0 %v372
        %v492 = vpop.f32.mrf.mxu0
        %v493 = vadd.f32 0.0, %v492
        %v494 = vpop.f32.mrf.mxu0
        %495 = vdwg.mxu0
        %496 = vmatpush.bf16.xpose.msra.mxu0 %v444
        %497 = vmatpush.bf16.xpose.msra.mxu0 %v441
        %498 = vmatpush.bf16.xpose.msra.mxu0 %v438
        %499 = vmatpush.bf16.xpose.msra.mxu0 %v435
        %500 = vmatpush.bf16.xpose.msra.mxu0 %v432
        %501 = vmatpush.bf16.xpose.msra.mxu0 %v429
        %502 = vmatpush.bf16.xpose.msra.mxu0 %v426
        %503 = vmatpush.bf16.xpose.msra.mxu0 %v423
        %504 = vmatmul.bf16.gmra.mxu0 %v372
        %v505 = vpop.f32.mrf.mxu0
        %v506 = vadd.f32 0.0, %v505
        %v507 = vpop.f32.mrf.mxu0
        %508 = vdwg.mxu0
        %509 = vmatpush.bf16.xpose.msra.mxu0 %v468
        %510 = vmatpush.bf16.xpose.msra.mxu0 %v465
        %511 = vmatpush.bf16.xpose.msra.mxu0 %v462
        %512 = vmatpush.bf16.xpose.msra.mxu0 %v459
        %513 = vmatpush.bf16.xpose.msra.mxu0 %v456
        %514 = vmatpush.bf16.xpose.msra.mxu0 %v453
        %515 = vmatpush.bf16.xpose.msra.mxu0 %v450
        %516 = vmatpush.bf16.xpose.msra.mxu0 %v447
        %517 = vmatmul.bf16.gmra.mxu0 %v372
        %v518 = vpop.f32.mrf.mxu0
        %v519 = vadd.f32 0.0, %v518
        %v520 = vpop.f32.mrf.mxu0
        %521 = vdwg.mxu0
        %v522 = vmul.f32 %v480, 20.0
        %v523 = vmul.f32 %v493, 20.0
        %v524 = vmul.f32 %v506, 20.0
        %v525 = vmul.f32 %v519, 20.0
        %526 = vst [vmem:[%s137] sm:$0xff] %v522
        %527 = vst [vmem:[%s137 + $0x8] sm:$0xff] %v523
        %528 = vst [vmem:[%s137 + $0x10] sm:$0xff] %v524
        %529 = vst [vmem:[%s137 + $0x18] sm:$0xff] %v525
        %s530 = sand.u32 %s71, 1
        %s531 = scalar_lea.sflag [#allocation3], %s530
        %s532 = sand.u32 %s71, 1
        %s533 = smul.addr %s532, 32
        %s534 = scalar_lea.vmem [#allocation2], %s533
        // Predicated region
        $region29: #{tpu_custom_call.1} parent=27 // pred_check
          %p535 = pneg %p81
        $region30: #{tpu_custom_call.1} parent=27 // pred_check_branch
          %537 = sbr.rel (%p535) target = $region32
        $region31: #{tpu_custom_call.1} parent=27 // pred_region
          %s538 = smul.u32 4, %s16
          %540 = vsyncadd %s531, 0
          %s541 = smul.addr %s538, 8
          %s542 = scalar_lea.hbm %s2, %s541
          %s544 = sshll.u32 %s534, 4
          %s545 = int_to_ptr.vmem [resolvable:$true] %s544
          %s546 = sshll.u32 %s542, 4
          %s547 = int_to_ptr.hbm [resolvable:$true] %s546
          %549 = dma.vmem_to_hbm [thread:$0]  %s545, 512, %s547, %s531
        $region32: #{tpu_custom_call.1} parent=27 // pred_fallthru
          _
      $region28: #{tpu_custom_call.1} parent=5 // pred_fallthru
        _
      %p550 = scmp.le.s32.totalorder 2, %s11
      // Predicated region
      $region33: #{tpu_custom_call.1} parent=5 // pred_check
        %p551 = pneg %p550
      $region34: #{tpu_custom_call.1} parent=5 // pred_check_branch
        %553 = sbr.rel (%p551) target = $region36
      $region35: #{tpu_custom_call.1} parent=5 // pred_region
        %s554 = ssub.s32 %s11, 2
        // Predicated region
        $region37: #{tpu_custom_call.1} parent=35 // pred_check
          %p555 = pneg %p87
        $region38: #{tpu_custom_call.1} parent=35 // pred_check_branch
          %557 = sbr.rel (%p555) target = $region40
        $region39: #{tpu_custom_call.1} parent=35 // pred_region
          %s558 = sand.u32 %s72, 1
          %s559 = scalar_lea.sflag [#allocation3], %s558
          %s560 = sand.u32 %s72, 1
          %s561 = smul.addr %s560, 32
          %s562 = scalar_lea.vmem [#allocation2], %s561
          %564 = dma.done %s559, 512
        $region40: #{tpu_custom_call.1} parent=35 // pred_fallthru
          _
      $region36: #{tpu_custom_call.1} parent=5 // pred_fallthru
        _
    $region6: #{tpu_custom_call.1} parent=1 // loop_footer
      %s15 = sadd.s32 1, %s11
    $region7: #{tpu_custom_call.1} parent=1 // loop_footer_branch
      %10 = sbr.rel target = $region3
    $region8: #{tpu_custom_call.1} parent=1 // loop_exit
      _
    %565 = vsyncpa [#allocation3], 1
    %s566 = scalar_lea.sflag [#allocation3], 1
    %567 = vsyncpa %s566, 1

</llo_original>
